<compile_context>
chip_gen: v7x
topology: tpu7x:2x2x1
jax: 0.10.0
libtpu: 0.0.40
codegen_flags: <defaults>
</compile_context>

<pallas_src>
import jax
import jax.numpy as jnp
from jax.experimental import pallas as pl
from jax.experimental.pallas import tpu as pltpu


# ---------------------------------------------------------------------------
# PyTorch-equivalent bicubic weight matrix (a = -0.75, align_corners=False)
# ---------------------------------------------------------------------------
def _bicubic_matrix(out_size: int, in_size: int, a: float = -0.75) -> jnp.ndarray:
    scale = in_size / out_size
    o = jnp.arange(out_size, dtype=jnp.float32)
    src = (o + 0.5) * scale - 0.5                  # align_corners=False mapping
    x0 = jnp.floor(src)
    t = src - x0

    def cc1(x):  # |x| <= 1
        return ((a + 2.0) * x - (a + 3.0)) * x * x + 1.0

    def cc2(x):  # 1 < |x| < 2
        return ((a * x - 5.0 * a) * x + 8.0 * a) * x - 4.0 * a

    w = jnp.stack([cc2(t + 1.0), cc1(t), cc1(1.0 - t), cc2(2.0 - t)], axis=1)  # (out, 4)
    idx = x0[:, None].astype(jnp.int32) + jnp.arange(-1, 3, dtype=jnp.int32)[None, :]
    idx = jnp.clip(idx, 0, in_size - 1)            # torch clamps border taps

    W = jnp.zeros((out_size, in_size), jnp.float32)
    W = W.at[jnp.arange(out_size)[:, None], idx].add(w)
    return W


# ---------------------------------------------------------------------------
# Padding-aware VMEM accounting + per-generation budgets
# ---------------------------------------------------------------------------
def _pad(n, m):
    return ((n + m - 1) // m) * m


def _sublane(dtype):
    # sublane multiple: 8 for 32-bit, 16 for 16-bit, 32 for 8-bit dtypes
    return max(8, 32 // jnp.dtype(dtype).itemsize)


def _chip_config():
    """Returns (per-step VMEM budget, min grid steps, vmem_limit_bytes)."""
    kind = ""
    try:
        kind = jax.devices()[0].device_kind.lower()
    except Exception:
        pass
    if "v5 lite" in kind or "v5e" in kind or "v5lite" in kind:
        # v5e: 16 MiB default scoped VMEM, single store slot -> stay small.
        return 12 * 1024 * 1024, 2, 32 * 1024 * 1024
    if "v7" in kind:
        # v7x: only 64 MiB VMEM per TC; want >=4 steps so each of the two TCs
        # gets a double-buffered stream.
        return 20 * 1024 * 1024, 4, 48 * 1024 * 1024
    # v6e (and default): single TC, 128 MiB physical VMEM -> big blocks.
    return 24 * 1024 * 1024, 2, 64 * 1024 * 1024


def _pick_tile_fused(nc, k, n_out, x_dtype, w_dtype, out_dtype, budget, min_steps):
    xi = jnp.dtype(x_dtype).itemsize
    wi = jnp.dtype(w_dtype).itemsize
    oi = jnp.dtype(out_dtype).itemsize

    def step_bytes(tile):
        xb = 2 * _pad(tile, _sublane(x_dtype)) * _pad(k, 128) * xi        # dbl-buffered input
        wb = 2 * _pad(k, _sublane(w_dtype)) * _pad(n_out, 128) * wi       # weight (conservative 2x)
        ob = 2 * _pad(tile, _sublane(out_dtype)) * _pad(n_out, 128) * oi  # dbl-buffered output
        acc = _pad(tile, 8) * _pad(n_out, 128) * 4                        # f32 matmul result
        return xb + wb + ob + acc

    divisors = [d for d in range(1, nc + 1) if nc % d == 0]
    # Keep Mosaic's (8,128) block rule happy: full extent or a multiple of 8.
    cands = [d for d in divisors if (d == nc or d % 8 == 0) and step_bytes(d) <= budget]
    if not cands:
        cands = [d for d in divisors if step_bytes(d) <= budget] or [1]
    tile = max(cands)

    # Back off for pipelining only while the GEMM M dim (= tile) stays >= 128.
    ok = [d for d in cands if nc // d >= min_steps and d >= 128]
    if ok:
        even = [d for d in ok if (nc // d) % 2 == 0]
        tile = max(even) if (min_steps >= 4 and even) else max(ok)
    return tile


# ---------------------------------------------------------------------------
# Kernels
# ---------------------------------------------------------------------------
def _fused_resize_kernel(x_ref, w_ref, o_ref):
    # Single lane-dense GEMM: (tile, K) @ (K, H_out*W_out) -> (tile, H_out*W_out)
    o_ref[...] = jnp.dot(
        x_ref[...], w_ref[...], preferred_element_type=jnp.float32
    ).astype(o_ref.dtype)


def _separable_resize_kernel(x_ref, wh_ref, ww_t_ref, o_ref):
    # Fallback for large spatial sizes: per-image separable two-GEMM.
    x = x_ref[0]                                                       # (H_in, W_in)
    t = jnp.dot(wh_ref[...], x, preferred_element_type=jnp.float32)   # (H_out, W_in)
    o = jnp.dot(t, ww_t_ref[...], preferred_element_type=jnp.float32)  # (H_out, W_out)
    o_ref[0] = o.astype(o_ref.dtype)


# ---------------------------------------------------------------------------
# Wrapper
# ---------------------------------------------------------------------------
def adjust_size(field: jnp.ndarray, width: int, height: int) -> jnp.ndarray:
    """Equivalent of AdjustSize(width, height, bicubic).forward(field), field NCHW."""
    N, C, H_in, W_in = field.shape
    H_out, W_out = int(width), int(height)          # size=(width, height) -> (H_out, W_out)
    NC = N * C

    budget, min_steps, vmem_limit = _chip_config()
    # bf16 x bf16 keeps the MXU on its fast path (acc stays f32); f32 otherwise.
    w_dtype = jnp.bfloat16 if field.dtype == jnp.bfloat16 else jnp.float32

    wh = _bicubic_matrix(H_out, H_in)                # (H_out, H_in) f32
    ww = _bicubic_matrix(W_out, W_in)                # (W_out, W_in) f32

    K, N_out = H_in * W_in, H_out * W_out
    kron_bytes = (_pad(K, _sublane(w_dtype)) * _pad(N_out, 128)
                  * jnp.dtype(w_dtype).itemsize)
    use_fused = kron_bytes <= 4 * 1024 * 1024

    if use_fused:
        # W_kron[h*W_in + w, o*W_out + p] = Wh[o, h] * Ww[p, w]
        w_kron = jnp.einsum("oh,pw->hwop", wh, ww).reshape(K, N_out).astype(w_dtype)
        x = field.reshape(NC, K)                     # contiguous -> free reshape

        tile = _pick_tile_fused(NC, K, N_out, x.dtype, w_dtype, field.dtype,
                                budget, min_steps)
        grid = (pl.cdiv(NC, tile),)

        flops = 2 * NC * K * N_out
        bytes_accessed = (x.size * x.dtype.itemsize
                          + NC * N_out * jnp.dtype(field.dtype).itemsize
                          + w_kron.size * jnp.dtype(w_dtype).itemsize)

        out = pl.pallas_call(
            _fused_resize_kernel,
            out_shape=jax.ShapeDtypeStruct((NC, N_out), field.dtype),
            grid_spec=pltpu.PrefetchScalarGridSpec(
                num_scalar_prefetch=0,
                grid=grid,
                in_specs=[
                    pl.BlockSpec((tile, K), lambda i: (i, 0)),
                    pl.BlockSpec((K, N_out), lambda i: (0, 0)),
                ],
                out_specs=pl.BlockSpec((tile, N_out), lambda i: (i, 0)),
            ),
            compiler_params=pltpu.CompilerParams(
                dimension_semantics=("parallel",),
                vmem_limit_bytes=vmem_limit),
            cost_estimate=pl.CostEstimate(
                flops=int(flops), transcendentals=0,
                bytes_accessed=int(bytes_accessed)),
        )(x, w_kron)
        return out.reshape(N, C, H_out, W_out)

    # ----- Fallback: per-image separable two-GEMM (large spatial sizes) -----
    # TODO(synk): for very large spatial sizes, tile the spatial dims and
    # K-tile the contraction with an f32 accumulator instead of full-spatial
    # one-image-per-step blocks.
    ww_t = ww.T                                      # (W_in, W_out)
    x = field.reshape(NC, H_in, W_in)

    flops = 2 * NC * (H_out * H_in * W_in + H_out * W_in * W_out)
    bytes_accessed = (x.size * x.dtype.itemsize
                      + NC * H_out * W_out * jnp.dtype(field.dtype).itemsize
                      + (wh.size + ww_t.size) * 4)

    out = pl.pallas_call(
        _separable_resize_kernel,
        out_shape=jax.ShapeDtypeStruct((NC, H_out, W_out), field.dtype),
        grid_spec=pltpu.PrefetchScalarGridSpec(
            num_scalar_prefetch=0,
            grid=(NC,),
            in_specs=[
                pl.BlockSpec((1, H_in, W_in), lambda i: (i, 0, 0)),
                pl.BlockSpec((H_out, H_in), lambda i: (0, 0)),
                pl.BlockSpec((W_in, W_out), lambda i: (0, 0)),
            ],
            out_specs=pl.BlockSpec((1, H_out, W_out), lambda i: (i, 0, 0)),
        ),
        compiler_params=pltpu.CompilerParams(
            dimension_semantics=("parallel",),
            vmem_limit_bytes=vmem_limit),
        cost_estimate=pl.CostEstimate(
            flops=int(flops), transcendentals=0,
            bytes_accessed=int(bytes_accessed)),
    )(x, wh, ww_t)
    return out.reshape(N, C, H_out, W_out)


# ---------------------------------------------------------------------------
if __name__ == "__main__":
    key = jax.random.PRNGKey(0)
    N, C, H, W = 2, 4, 16, 16
    width, height = 32, 24                           # target size=(width, height)

    field = jax.random.normal(key, (N, C, H, W), dtype=jnp.float32)

    out = adjust_size(field, width, height)
    out = jax.block_until_ready(out)
    assert out.shape == (N, C, width, height), out.shape

    # Pure-JAX reference using the same separable bicubic formulation
    # (validates the Pallas plumbing; torch golden-value check done offline).
    wh_ref = _bicubic_matrix(width, H)
    ww_ref = _bicubic_matrix(height, W)
    ref = jnp.einsum("oh,nchw,pw->ncop", wh_ref, field.astype(jnp.float32), ww_ref)
    err = float(jnp.max(jnp.abs(out.astype(jnp.float32) - ref)))
    assert jnp.allclose(out.astype(jnp.float32), ref, atol=1e-4, rtol=1e-4), err

    print("KERNEL_OK")
</pallas_src>

<mosaic_0001>
module attributes {stable_mosaic.version = 11 : i64} {
  func.func @_fused_resize_kernel(%arg0: i32, %arg1: memref<8x256xf32, #tpu.memory_space<vmem>>, %arg2: memref<256x768xf32, #tpu.memory_space<vmem>>, %arg3: memref<8x768xf32, #tpu.memory_space<vmem>>) attributes {dimension_semantics = [#tpu.dimension_semantics<parallel>], iteration_bounds = array<i64: 1>, scalar_prefetch = 0 : i64, scratch_operands = 0 : i64, tpu.core_type = #tpu.core_type<tc>, window_params = [{transform_indices = @transform_0, window_bounds = array<i64: 8, 256>}, {pipeline_mode = #tpu.pipeline_mode<synchronous>, transform_indices = @transform_1, window_bounds = array<i64: 256, 768>}, {transform_indices = @transform_2, window_bounds = array<i64: 8, 768>}]} {
    %c0 = arith.constant 0 : index
    %c0_0 = arith.constant 0 : index
    %0 = vector.load %arg1[%c0, %c0_0] : memref<8x256xf32, #tpu.memory_space<vmem>>, vector<8x256xf32>
    %c0_1 = arith.constant 0 : index
    %c0_2 = arith.constant 0 : index
    %1 = vector.load %arg2[%c0_1, %c0_2] : memref<256x768xf32, #tpu.memory_space<vmem>>, vector<256x768xf32>
    %cst = arith.constant dense<0.000000e+00> : vector<8x768xf32>
    %2 = tpu.matmul %0, %1, %cst {dimension_numbers = #tpu.dot_dimension_numbers<[1], [0], [0], [1], [0, 0, 1, 1], [], []>} : vector<8x256xf32>, vector<256x768xf32>, vector<8x768xf32> -> vector<8x768xf32>
    %c0_3 = arith.constant 0 : index
    %c0_4 = arith.constant 0 : index
    %3 = vector.load %arg3[%c0_3, %c0_4] : memref<8x768xf32, #tpu.memory_space<vmem>>, vector<8x768xf32>
    tpu.vector_store %arg3[%c0_3, %c0_4], %2 {strides = array<i32>} : memref<8x768xf32, #tpu.memory_space<vmem>>, vector<8x768xf32>,
    return
  }
  func.func @transform_0(%arg0: i32) -> (i32, i32) {
    %c0_i32 = arith.constant 0 : i32
    %c0_i32_0 = arith.constant 0 : i32
    return %arg0, %c0_i32 : i32, i32
  }
  func.func @transform_1(%arg0: i32) -> (i32, i32) {
    %c0_i32 = arith.constant 0 : i32
    %c0_i32_0 = arith.constant 0 : i32
    %c0_i32_1 = arith.constant 0 : i32
    return %c0_i32, %c0_i32_0 : i32, i32
  }
  func.func @transform_2(%arg0: i32) -> (i32, i32) {
    %c0_i32 = arith.constant 0 : i32
    %c0_i32_0 = arith.constant 0 : i32
    return %arg0, %c0_i32 : i32, i32
  }
}

</mosaic_0001>

<llo_original>
// kernel: tpu_custom_call.1
$region0: #{tpu_custom_call.1}
  #allocation0 [shape = 'u32[]', space=smem, size = 0x4, offset = 0x4, fixed_abs, tag = 'smem constant byte address 0x4 - core index']
  #allocation1 [shape = 'u32[144,128]{1,0:T(1,128)}', space=vmem, size = 0x12000, scoped, tag = 'internal scratch']
  %s0 = inlined_call_operand.hbm [shape: f32[8,256], index: 0, kind: input, shape index: {}]
  %s1 = inlined_call_operand.hbm [shape: f32[256,768], index: 1, kind: input, shape index: {}]
  %s2 = inlined_call_operand.hbm [shape: f32[8,768], index: 2, kind: output, shape index: {}]
  %s3 = sld [smem:[#allocation0]]
  $region26: #{tpu_custom_call.1} parent=0
    _
  %s5 = ssub.s32 1, %s3
  %s6 = scalar_select 0, %s5, %s3
  $region1: #{tpu_custom_call.1} parent=0
    #allocation2 [shape = 'u8[8192]{0}', space=vmem, size = 0x2000, scoped, tag = 'input window, operand 0, single buffered']
    #allocation3 [shape = 's32[1]{0}', space=sflag, size = 0x4, scoped, tag = 'scoped memory for tpu_custom_call.1']
    #allocation4 [shape = 's32[1]{0}', space=sflag, size = 0x4, scoped, tag = 'scoped memory for tpu_custom_call.1']
    #allocation5 [shape = 'u8[786432]{0}', space=vmem, size = 0xc0000, scoped, tag = 'input window, operand 1, single buffered']
    #allocation6 [shape = 's32[1]{0}', space=sflag, size = 0x4, scoped, tag = 'scoped memory for tpu_custom_call.1']
    #allocation7 [shape = 'u8[24576]{0}', space=vmem, size = 0x6000, scoped, tag = 'output window, operand 0, single buffered']
    %7 = vsyncpa [#allocation3], 0
    %8 = vsyncpa [#allocation6], 0
    %9 = vsyncpa [#allocation4], 0
    // Predicated region
    $region2: #{tpu_custom_call.1} parent=1 // pred_check
      _
    $region3: #{tpu_custom_call.1} parent=1 // pred_check_branch
      %11 = sbr.rel (0) target = $region5
    $region4: #{tpu_custom_call.1} parent=1 // pred_region
      %s13 = ssub.s32 256, 256
      %14 = vsyncadd [#allocation3], %s13
      %s16 = sshll.u32 [#allocation2], 4
      %s17 = int_to_ptr.vmem [resolvable:$true] %s16
      %19 = dma.hbm_to_vmem [thread:$0]  %s0, 256, %s17, [#allocation3]
    $region5: #{tpu_custom_call.1} parent=1 // pred_fallthru
      _
    // Predicated region
    $region6: #{tpu_custom_call.1} parent=1 // pred_check
      _
    $region7: #{tpu_custom_call.1} parent=1 // pred_check_branch
      %21 = sbr.rel (0) target = $region9
    $region8: #{tpu_custom_call.1} parent=1 // pred_region
      %s23 = ssub.s32 24576, 24576
      %24 = vsyncadd [#allocation6], %s23
      %s25 = sshll.u32 [#allocation5], 4
      %s26 = int_to_ptr.vmem [resolvable:$true] %s25
      %31 = dma.hbm_to_vmem [thread:$0]  %s1, 24576, %s26, [#allocation6], 768, 768, 48
    $region9: #{tpu_custom_call.1} parent=1 // pred_fallthru
      _
    // Predicated region
    $region10: #{tpu_custom_call.1} parent=1 // pred_check
      _
    $region11: #{tpu_custom_call.1} parent=1 // pred_check_branch
      %33 = sbr.rel (0) target = $region13
    $region12: #{tpu_custom_call.1} parent=1 // pred_region
      %34 = dma.done [#allocation3], 256
    $region13: #{tpu_custom_call.1} parent=1 // pred_fallthru
      _
    // Predicated region
    $region14: #{tpu_custom_call.1} parent=1 // pred_check
      _
    $region15: #{tpu_custom_call.1} parent=1 // pred_check_branch
      %36 = sbr.rel (0) target = $region17
    $region16: #{tpu_custom_call.1} parent=1 // pred_region
      %37 = dma.done [#allocation6], 24576
    $region17: #{tpu_custom_call.1} parent=1 // pred_fallthru
      _
    %v38 = vld [vmem:[#allocation2] sm:$0xff]
    %v39 = vld [vmem:[#allocation2 + $0x8] sm:$0xff]
    %v40 = vld [vmem:[#allocation5] sm:$0xff]
    %v41 = vld [vmem:[#allocation5 + $0x8] sm:$0xff]
    %v42 = vld [vmem:[#allocation5 + $0x10] sm:$0xff]
    %v43 = vld [vmem:[#allocation5 + $0x18] sm:$0xff]
    %v44 = vld [vmem:[#allocation5 + $0x20] sm:$0xff]
    %v45 = vld [vmem:[#allocation5 + $0x28] sm:$0xff]
    %v46 = vld [vmem:[#allocation5 + $0x30] sm:$0xff]
    %v47 = vld [vmem:[#allocation5 + $0x38] sm:$0xff]
    %v48 = vld [vmem:[#allocation5 + $0x40] sm:$0xff]
    %v49 = vld [vmem:[#allocation5 + $0x48] sm:$0xff]
    %v50 = vld [vmem:[#allocation5 + $0x50] sm:$0xff]
    %v51 = vld [vmem:[#allocation5 + $0x58] sm:$0xff]
    %v52 = vld [vmem:[#allocation5 + $0x60] sm:$0xff]
    %v53 = vld [vmem:[#allocation5 + $0x68] sm:$0xff]
    %v54 = vld [vmem:[#allocation5 + $0x70] sm:$0xff]
    %v55 = vld [vmem:[#allocation5 + $0x78] sm:$0xff]
    %v56 = vld [vmem:[#allocation5 + $0x80] sm:$0xff]
    %v57 = vld [vmem:[#allocation5 + $0x88] sm:$0xff]
    %v58 = vld [vmem:[#allocation5 + $0x90] sm:$0xff]
    %v59 = vld [vmem:[#allocation5 + $0x98] sm:$0xff]
    %v60 = vld [vmem:[#allocation5 + $0xa0] sm:$0xff]
    %v61 = vld [vmem:[#allocation5 + $0xa8] sm:$0xff]
    %v62 = vld [vmem:[#allocation5 + $0xb0] sm:$0xff]
    %v63 = vld [vmem:[#allocation5 + $0xb8] sm:$0xff]
    %v64 = vld [vmem:[#allocation5 + $0xc0] sm:$0xff]
    %v65 = vld [vmem:[#allocation5 + $0xc8] sm:$0xff]
    %v66 = vld [vmem:[#allocation5 + $0xd0] sm:$0xff]
    %v67 = vld [vmem:[#allocation5 + $0xd8] sm:$0xff]
    %v68 = vld [vmem:[#allocation5 + $0xe0] sm:$0xff]
    %v69 = vld [vmem:[#allocation5 + $0xe8] sm:$0xff]
    %v70 = vld [vmem:[#allocation5 + $0xf0] sm:$0xff]
    %v71 = vld [vmem:[#allocation5 + $0xf8] sm:$0xff]
    %v72 = vld [vmem:[#allocation5 + $0x100] sm:$0xff]
    %v73 = vld [vmem:[#allocation5 + $0x108] sm:$0xff]
    %v74 = vld [vmem:[#allocation5 + $0x110] sm:$0xff]
    %v75 = vld [vmem:[#allocation5 + $0x118] sm:$0xff]
    %v76 = vld [vmem:[#allocation5 + $0x120] sm:$0xff]
    %v77 = vld [vmem:[#allocation5 + $0x128] sm:$0xff]
    %v78 = vld [vmem:[#allocation5 + $0x130] sm:$0xff]
    %v79 = vld [vmem:[#allocation5 + $0x138] sm:$0xff]
    %v80 = vld [vmem:[#allocation5 + $0x140] sm:$0xff]
    %v81 = vld [vmem:[#allocation5 + $0x148] sm:$0xff]
    %v82 = vld [vmem:[#allocation5 + $0x150] sm:$0xff]
    %v83 = vld [vmem:[#allocation5 + $0x158] sm:$0xff]
    %v84 = vld [vmem:[#allocation5 + $0x160] sm:$0xff]
    %v85 = vld [vmem:[#allocation5 + $0x168] sm:$0xff]
    %v86 = vld [vmem:[#allocation5 + $0x170] sm:$0xff]
    %v87 = vld [vmem:[#allocation5 + $0x178] sm:$0xff]
    %v88 = vld [vmem:[#allocation5 + $0x180] sm:$0xff]
    %v89 = vld [vmem:[#allocation5 + $0x188] sm:$0xff]
    %v90 = vld [vmem:[#allocation5 + $0x190] sm:$0xff]
    %v91 = vld [vmem:[#allocation5 + $0x198] sm:$0xff]
    %v92 = vld [vmem:[#allocation5 + $0x1a0] sm:$0xff]
    %v93 = vld [vmem:[#allocation5 + $0x1a8] sm:$0xff]
    %v94 = vld [vmem:[#allocation5 + $0x1b0] sm:$0xff]
    %v95 = vld [vmem:[#allocation5 + $0x1b8] sm:$0xff]
    %v96 = vld [vmem:[#allocation5 + $0x1c0] sm:$0xff]
    %v97 = vld [vmem:[#allocation5 + $0x1c8] sm:$0xff]
    %v98 = vld [vmem:[#allocation5 + $0x1d0] sm:$0xff]
    %v99 = vld [vmem:[#allocation5 + $0x1d8] sm:$0xff]
    %v100 = vld [vmem:[#allocation5 + $0x1e0] sm:$0xff]
    %v101 = vld [vmem:[#allocation5 + $0x1e8] sm:$0xff]
    %v102 = vld [vmem:[#allocation5 + $0x1f0] sm:$0xff]
    %v103 = vld [vmem:[#allocation5 + $0x1f8] sm:$0xff]
    %v104 = vld [vmem:[#allocation5 + $0x200] sm:$0xff]
    %v105 = vld [vmem:[#allocation5 + $0x208] sm:$0xff]
    %v106 = vld [vmem:[#allocation5 + $0x210] sm:$0xff]
    %v107 = vld [vmem:[#allocation5 + $0x218] sm:$0xff]
    %v108 = vld [vmem:[#allocation5 + $0x220] sm:$0xff]
    %v109 = vld [vmem:[#allocation5 + $0x228] sm:$0xff]
    %v110 = vld [vmem:[#allocation5 + $0x230] sm:$0xff]
    %v111 = vld [vmem:[#allocation5 + $0x238] sm:$0xff]
    %v112 = vld [vmem:[#allocation5 + $0x240] sm:$0xff]
    %v113 = vld [vmem:[#allocation5 + $0x248] sm:$0xff]
    %v114 = vld [vmem:[#allocation5 + $0x250] sm:$0xff]
    %v115 = vld [vmem:[#allocation5 + $0x258] sm:$0xff]
    %v116 = vld [vmem:[#allocation5 + $0x260] sm:$0xff]
    %v117 = vld [vmem:[#allocation5 + $0x268] sm:$0xff]
    %v118 = vld [vmem:[#allocation5 + $0x270] sm:$0xff]
    %v119 = vld [vmem:[#allocation5 + $0x278] sm:$0xff]
    %v120 = vld [vmem:[#allocation5 + $0x280] sm:$0xff]
    %v121 = vld [vmem:[#allocation5 + $0x288] sm:$0xff]
    %v122 = vld [vmem:[#allocation5 + $0x290] sm:$0xff]
    %v123 = vld [vmem:[#allocation5 + $0x298] sm:$0xff]
    %v124 = vld [vmem:[#allocation5 + $0x2a0] sm:$0xff]
    %v125 = vld [vmem:[#allocation5 + $0x2a8] sm:$0xff]
    %v126 = vld [vmem:[#allocation5 + $0x2b0] sm:$0xff]
    %v127 = vld [vmem:[#allocation5 + $0x2b8] sm:$0xff]
    %v128 = vld [vmem:[#allocation5 + $0x2c0] sm:$0xff]
    %v129 = vld [vmem:[#allocation5 + $0x2c8] sm:$0xff]
    %v130 = vld [vmem:[#allocation5 + $0x2d0] sm:$0xff]
    %v131 = vld [vmem:[#allocation5 + $0x2d8] sm:$0xff]
    %v132 = vld [vmem:[#allocation5 + $0x2e0] sm:$0xff]
    %v133 = vld [vmem:[#allocation5 + $0x2e8] sm:$0xff]
    %v134 = vld [vmem:[#allocation5 + $0x2f0] sm:$0xff]
    %v135 = vld [vmem:[#allocation5 + $0x2f8] sm:$0xff]
    %v136 = vld [vmem:[#allocation5 + $0x300] sm:$0xff]
    %v137 = vld [vmem:[#allocation5 + $0x308] sm:$0xff]
    %v138 = vld [vmem:[#allocation5 + $0x310] sm:$0xff]
    %v139 = vld [vmem:[#allocation5 + $0x318] sm:$0xff]
    %v140 = vld [vmem:[#allocation5 + $0x320] sm:$0xff]
    %v141 = vld [vmem:[#allocation5 + $0x328] sm:$0xff]
    %v142 = vld [vmem:[#allocation5 + $0x330] sm:$0xff]
    %v143 = vld [vmem:[#allocation5 + $0x338] sm:$0xff]
    %v144 = vld [vmem:[#allocation5 + $0x340] sm:$0xff]
    %v145 = vld [vmem:[#allocation5 + $0x348] sm:$0xff]
    %v146 = vld [vmem:[#allocation5 + $0x350] sm:$0xff]
    %v147 = vld [vmem:[#allocation5 + $0x358] sm:$0xff]
    %v148 = vld [vmem:[#allocation5 + $0x360] sm:$0xff]
    %v149 = vld [vmem:[#allocation5 + $0x368] sm:$0xff]
    %v150 = vld [vmem:[#allocation5 + $0x370] sm:$0xff]
    %v151 = vld [vmem:[#allocation5 + $0x378] sm:$0xff]
    %v152 = vld [vmem:[#allocation5 + $0x380] sm:$0xff]
    %v153 = vld [vmem:[#allocation5 + $0x388] sm:$0xff]
    %v154 = vld [vmem:[#allocation5 + $0x390] sm:$0xff]
    %v155 = vld [vmem:[#allocation5 + $0x398] sm:$0xff]
    %v156 = vld [vmem:[#allocation5 + $0x3a0] sm:$0xff]
    %v157 = vld [vmem:[#allocation5 + $0x3a8] sm:$0xff]
    %v158 = vld [vmem:[#allocation5 + $0x3b0] sm:$0xff]
    %v159 = vld [vmem:[#allocation5 + $0x3b8] sm:$0xff]
    %v160 = vld [vmem:[#allocation5 + $0x3c0] sm:$0xff]
    %v161 = vld [vmem:[#allocation5 + $0x3c8] sm:$0xff]
    %v162 = vld [vmem:[#allocation5 + $0x3d0] sm:$0xff]
    %v163 = vld [vmem:[#allocation5 + $0x3d8] sm:$0xff]
    %v164 = vld [vmem:[#allocation5 + $0x3e0] sm:$0xff]
    %v165 = vld [vmem:[#allocation5 + $0x3e8] sm:$0xff]
    %v166 = vld [vmem:[#allocation5 + $0x3f0] sm:$0xff]
    %v167 = vld [vmem:[#allocation5 + $0x3f8] sm:$0xff]
    %v168 = vld [vmem:[#allocation5 + $0x400] sm:$0xff]
    %v169 = vld [vmem:[#allocation5 + $0x408] sm:$0xff]
    %v170 = vld [vmem:[#allocation5 + $0x410] sm:$0xff]
    %v171 = vld [vmem:[#allocation5 + $0x418] sm:$0xff]
    %v172 = vld [vmem:[#allocation5 + $0x420] sm:$0xff]
    %v173 = vld [vmem:[#allocation5 + $0x428] sm:$0xff]
    %v174 = vld [vmem:[#allocation5 + $0x430] sm:$0xff]
    %v175 = vld [vmem:[#allocation5 + $0x438] sm:$0xff]
    %v176 = vld [vmem:[#allocation5 + $0x440] sm:$0xff]
    %v177 = vld [vmem:[#allocation5 + $0x448] sm:$0xff]
    %v178 = vld [vmem:[#allocation5 + $0x450] sm:$0xff]
    %v179 = vld [vmem:[#allocation5 + $0x458] sm:$0xff]
    %v180 = vld [vmem:[#allocation5 + $0x460] sm:$0xff]
    %v181 = vld [vmem:[#allocation5 + $0x468] sm:$0xff]
    %v182 = vld [vmem:[#allocation5 + $0x470] sm:$0xff]
    %v183 = vld [vmem:[#allocation5 + $0x478] sm:$0xff]
    %v184 = vld [vmem:[#allocation5 + $0x480] sm:$0xff]
    %v185 = vld [vmem:[#allocation5 + $0x488] sm:$0xff]
    %v186 = vld [vmem:[#allocation5 + $0x490] sm:$0xff]
    %v187 = vld [vmem:[#allocation5 + $0x498] sm:$0xff]
    %v188 = vld [vmem:[#allocation5 + $0x4a0] sm:$0xff]
    %v189 = vld [vmem:[#allocation5 + $0x4a8] sm:$0xff]
    %v190 = vld [vmem:[#allocation5 + $0x4b0] sm:$0xff]
    %v191 = vld [vmem:[#allocation5 + $0x4b8] sm:$0xff]
    %v192 = vld [vmem:[#allocation5 + $0x4c0] sm:$0xff]
    %v193 = vld [vmem:[#allocation5 + $0x4c8] sm:$0xff]
    %v194 = vld [vmem:[#allocation5 + $0x4d0] sm:$0xff]
    %v195 = vld [vmem:[#allocation5 + $0x4d8] sm:$0xff]
    %v196 = vld [vmem:[#allocation5 + $0x4e0] sm:$0xff]
    %v197 = vld [vmem:[#allocation5 + $0x4e8] sm:$0xff]
    %v198 = vld [vmem:[#allocation5 + $0x4f0] sm:$0xff]
    %v199 = vld [vmem:[#allocation5 + $0x4f8] sm:$0xff]
    %v200 = vld [vmem:[#allocation5 + $0x500] sm:$0xff]
    %v201 = vld [vmem:[#allocation5 + $0x508] sm:$0xff]
    %v202 = vld [vmem:[#allocation5 + $0x510] sm:$0xff]
    %v203 = vld [vmem:[#allocation5 + $0x518] sm:$0xff]
    %v204 = vld [vmem:[#allocation5 + $0x520] sm:$0xff]
    %v205 = vld [vmem:[#allocation5 + $0x528] sm:$0xff]
    %v206 = vld [vmem:[#allocation5 + $0x530] sm:$0xff]
    %v207 = vld [vmem:[#allocation5 + $0x538] sm:$0xff]
    %v208 = vld [vmem:[#allocation5 + $0x540] sm:$0xff]
    %v209 = vld [vmem:[#allocation5 + $0x548] sm:$0xff]
    %v210 = vld [vmem:[#allocation5 + $0x550] sm:$0xff]
    %v211 = vld [vmem:[#allocation5 + $0x558] sm:$0xff]
    %v212 = vld [vmem:[#allocation5 + $0x560] sm:$0xff]
    %v213 = vld [vmem:[#allocation5 + $0x568] sm:$0xff]
    %v214 = vld [vmem:[#allocation5 + $0x570] sm:$0xff]
    %v215 = vld [vmem:[#allocation5 + $0x578] sm:$0xff]
    %v216 = vld [vmem:[#allocation5 + $0x580] sm:$0xff]
    %v217 = vld [vmem:[#allocation5 + $0x588] sm:$0xff]
    %v218 = vld [vmem:[#allocation5 + $0x590] sm:$0xff]
    %v219 = vld [vmem:[#allocation5 + $0x598] sm:$0xff]
    %v220 = vld [vmem:[#allocation5 + $0x5a0] sm:$0xff]
    %v221 = vld [vmem:[#allocation5 + $0x5a8] sm:$0xff]
    %v222 = vld [vmem:[#allocation5 + $0x5b0] sm:$0xff]
    %v223 = vld [vmem:[#allocation5 + $0x5b8] sm:$0xff]
    %v224 = vld [vmem:[#allocation5 + $0x5c0] sm:$0xff]
    %v225 = vld [vmem:[#allocation5 + $0x5c8] sm:$0xff]
    %v226 = vld [vmem:[#allocation5 + $0x5d0] sm:$0xff]
    %v227 = vld [vmem:[#allocation5 + $0x5d8] sm:$0xff]
    %v228 = vld [vmem:[#allocation5 + $0x5e0] sm:$0xff]
    %v229 = vld [vmem:[#allocation5 + $0x5e8] sm:$0xff]
    %v230 = vld [vmem:[#allocation5 + $0x5f0] sm:$0xff]
    %v231 = vld [vmem:[#allocation5 + $0x5f8] sm:$0xff]
    %232 = vmatprep.subr.mxu0 %v41
    %233 = vmatpush1.msra.mxu0 %v40
    %234 = vmatprep.subr.mxu0 %v47
    %235 = vmatpush1.msra.mxu0 %v46
    %236 = vmatprep.subr.mxu0 %v53
    %237 = vmatpush1.msra.mxu0 %v52
    %238 = vmatprep.subr.mxu0 %v59
    %239 = vmatpush1.msra.mxu0 %v58
    %240 = vmatprep.subr.mxu0 %v65
    %241 = vmatpush1.msra.mxu0 %v64
    %242 = vmatprep.subr.mxu0 %v71
    %243 = vmatpush1.msra.mxu0 %v70
    %244 = vmatprep.subr.mxu0 %v77
    %245 = vmatpush1.msra.mxu0 %v76
    %246 = vmatprep.subr.mxu0 %v83
    %247 = vmatpush1.msra.mxu0 %v82
    %248 = vmatprep.subr.mxu0 %v89
    %249 = vmatpush1.msra.mxu0 %v88
    %250 = vmatprep.subr.mxu0 %v95
    %251 = vmatpush1.msra.mxu0 %v94
    %252 = vmatprep.subr.mxu0 %v101
    %253 = vmatpush1.msra.mxu0 %v100
    %254 = vmatprep.subr.mxu0 %v107
    %255 = vmatpush1.msra.mxu0 %v106
    %256 = vmatprep.subr.mxu0 %v113
    %257 = vmatpush1.msra.mxu0 %v112
    %258 = vmatprep.subr.mxu0 %v119
    %259 = vmatpush1.msra.mxu0 %v118
    %260 = vmatprep.subr.mxu0 %v125
    %261 = vmatpush1.msra.mxu0 %v124
    %262 = vmatprep.subr.mxu0 %v131
    %263 = vmatpush1.msra.mxu0 %v130
    %264 = vmatprep.subr.mxu0 %v137
    %265 = vmatpush1.msra.mxu0 %v136
    %266 = vmatprep.subr.mxu0 %v143
    %267 = vmatpush1.msra.mxu0 %v142
    %268 = vmatprep.subr.mxu0 %v149
    %269 = vmatpush1.msra.mxu0 %v148
    %270 = vmatprep.subr.mxu0 %v155
    %271 = vmatpush1.msra.mxu0 %v154
    %272 = vmatprep.subr.mxu0 %v161
    %273 = vmatpush1.msra.mxu0 %v160
    %274 = vmatprep.subr.mxu0 %v167
    %275 = vmatpush1.msra.mxu0 %v166
    %276 = vmatprep.subr.mxu0 %v173
    %277 = vmatpush1.msra.mxu0 %v172
    %278 = vmatprep.subr.mxu0 %v179
    %279 = vmatpush1.msra.mxu0 %v178
    %280 = vmatprep.subr.mxu0 %v185
    %281 = vmatpush1.msra.mxu0 %v184
    %282 = vmatprep.subr.mxu0 %v191
    %283 = vmatpush1.msra.mxu0 %v190
    %284 = vmatprep.subr.mxu0 %v197
    %285 = vmatpush1.msra.mxu0 %v196
    %286 = vmatprep.subr.mxu0 %v203
    %287 = vmatpush1.msra.mxu0 %v202
    %288 = vmatprep.subr.mxu0 %v209
    %289 = vmatpush1.msra.mxu0 %v208
    %290 = vmatprep.subr.mxu0 %v215
    %291 = vmatpush1.msra.mxu0 %v214
    %292 = vmatprep.subr.mxu0 %v221
    %293 = vmatpush1.msra.mxu0 %v220
    %294 = vmatprep.subr.mxu0 %v227
    %295 = vmatpush1.msra.mxu0 %v226
    %296 = vmatprep.mubr.f32.mxu0 %v39
    %297 = vmatmul.mubr.f32.gmra.mrb[0].mxu0 %v38
    %v298 = vpop.f32.mrb[0].mxu0
    %v299 = vadd.f32 0.0, %v298
    %v300 = vpop.f32.mrb[0].mxu0
    %v301 = vadd.f32 0.0, %v300
    %302 = vdwg.mxu0
    %303 = vmatprep.subr.mxu0 %v43
    %304 = vmatpush1.msra.mxu0 %v42
    %305 = vmatprep.subr.mxu0 %v49
    %306 = vmatpush1.msra.mxu0 %v48
    %307 = vmatprep.subr.mxu0 %v55
    %308 = vmatpush1.msra.mxu0 %v54
    %309 = vmatprep.subr.mxu0 %v61
    %310 = vmatpush1.msra.mxu0 %v60
    %311 = vmatprep.subr.mxu0 %v67
    %312 = vmatpush1.msra.mxu0 %v66
    %313 = vmatprep.subr.mxu0 %v73
    %314 = vmatpush1.msra.mxu0 %v72
    %315 = vmatprep.subr.mxu0 %v79
    %316 = vmatpush1.msra.mxu0 %v78
    %317 = vmatprep.subr.mxu0 %v85
    %318 = vmatpush1.msra.mxu0 %v84
    %319 = vmatprep.subr.mxu0 %v91
    %320 = vmatpush1.msra.mxu0 %v90
    %321 = vmatprep.subr.mxu0 %v97
    %322 = vmatpush1.msra.mxu0 %v96
    %323 = vmatprep.subr.mxu0 %v103
    %324 = vmatpush1.msra.mxu0 %v102
    %325 = vmatprep.subr.mxu0 %v109
    %326 = vmatpush1.msra.mxu0 %v108
    %327 = vmatprep.subr.mxu0 %v115
    %328 = vmatpush1.msra.mxu0 %v114
    %329 = vmatprep.subr.mxu0 %v121
    %330 = vmatpush1.msra.mxu0 %v120
    %331 = vmatprep.subr.mxu0 %v127
    %332 = vmatpush1.msra.mxu0 %v126
    %333 = vmatprep.subr.mxu0 %v133
    %334 = vmatpush1.msra.mxu0 %v132
    %335 = vmatprep.subr.mxu0 %v139
    %336 = vmatpush1.msra.mxu0 %v138
    %337 = vmatprep.subr.mxu0 %v145
    %338 = vmatpush1.msra.mxu0 %v144
    %339 = vmatprep.subr.mxu0 %v151
    %340 = vmatpush1.msra.mxu0 %v150
    %341 = vmatprep.subr.mxu0 %v157
    %342 = vmatpush1.msra.mxu0 %v156
    %343 = vmatprep.subr.mxu0 %v163
    %344 = vmatpush1.msra.mxu0 %v162
    %345 = vmatprep.subr.mxu0 %v169
    %346 = vmatpush1.msra.mxu0 %v168
    %347 = vmatprep.subr.mxu0 %v175
    %348 = vmatpush1.msra.mxu0 %v174
    %349 = vmatprep.subr.mxu0 %v181
    %350 = vmatpush1.msra.mxu0 %v180
    %351 = vmatprep.subr.mxu0 %v187
    %352 = vmatpush1.msra.mxu0 %v186
    %353 = vmatprep.subr.mxu0 %v193
    %354 = vmatpush1.msra.mxu0 %v192
    %355 = vmatprep.subr.mxu0 %v199
    %356 = vmatpush1.msra.mxu0 %v198
    %357 = vmatprep.subr.mxu0 %v205
    %358 = vmatpush1.msra.mxu0 %v204
    %359 = vmatprep.subr.mxu0 %v211
    %360 = vmatpush1.msra.mxu0 %v210
    %361 = vmatprep.subr.mxu0 %v217
    %362 = vmatpush1.msra.mxu0 %v216
    %363 = vmatprep.subr.mxu0 %v223
    %364 = vmatpush1.msra.mxu0 %v222
    %365 = vmatprep.subr.mxu0 %v229
    %366 = vmatpush1.msra.mxu0 %v228
    %367 = vmatprep.mubr.f32.mxu0 %v39
    %368 = vmatmul.mubr.f32.gmra.mrb[0].mxu0 %v38
    %v369 = vpop.f32.mrb[0].mxu0
    %v370 = vadd.f32 0.0, %v369
    %v371 = vpop.f32.mrb[0].mxu0
    %v372 = vadd.f32 0.0, %v371
    %373 = vdwg.mxu0
    %374 = vmatprep.subr.mxu0 %v45
    %375 = vmatpush1.msra.mxu0 %v44
    %376 = vmatprep.subr.mxu0 %v51
    %377 = vmatpush1.msra.mxu0 %v50
    %378 = vmatprep.subr.mxu0 %v57
    %379 = vmatpush1.msra.mxu0 %v56
    %380 = vmatprep.subr.mxu0 %v63
    %381 = vmatpush1.msra.mxu0 %v62
    %382 = vmatprep.subr.mxu0 %v69
    %383 = vmatpush1.msra.mxu0 %v68
    %384 = vmatprep.subr.mxu0 %v75
    %385 = vmatpush1.msra.mxu0 %v74
    %386 = vmatprep.subr.mxu0 %v81
    %387 = vmatpush1.msra.mxu0 %v80
    %388 = vmatprep.subr.mxu0 %v87
    %389 = vmatpush1.msra.mxu0 %v86
    %390 = vmatprep.subr.mxu0 %v93
    %391 = vmatpush1.msra.mxu0 %v92
    %392 = vmatprep.subr.mxu0 %v99
    %393 = vmatpush1.msra.mxu0 %v98
    %394 = vmatprep.subr.mxu0 %v105
    %395 = vmatpush1.msra.mxu0 %v104
    %396 = vmatprep.subr.mxu0 %v111
    %397 = vmatpush1.msra.mxu0 %v110
    %398 = vmatprep.subr.mxu0 %v117
    %399 = vmatpush1.msra.mxu0 %v116
    %400 = vmatprep.subr.mxu0 %v123
    %401 = vmatpush1.msra.mxu0 %v122
    %402 = vmatprep.subr.mxu0 %v129
    %403 = vmatpush1.msra.mxu0 %v128
    %404 = vmatprep.subr.mxu0 %v135
    %405 = vmatpush1.msra.mxu0 %v134
    %406 = vmatprep.subr.mxu0 %v141
    %407 = vmatpush1.msra.mxu0 %v140
    %408 = vmatprep.subr.mxu0 %v147
    %409 = vmatpush1.msra.mxu0 %v146
    %410 = vmatprep.subr.mxu0 %v153
    %411 = vmatpush1.msra.mxu0 %v152
    %412 = vmatprep.subr.mxu0 %v159
    %413 = vmatpush1.msra.mxu0 %v158
    %414 = vmatprep.subr.mxu0 %v165
    %415 = vmatpush1.msra.mxu0 %v164
    %416 = vmatprep.subr.mxu0 %v171
    %417 = vmatpush1.msra.mxu0 %v170
    %418 = vmatprep.subr.mxu0 %v177
    %419 = vmatpush1.msra.mxu0 %v176
    %420 = vmatprep.subr.mxu0 %v183
    %421 = vmatpush1.msra.mxu0 %v182
    %422 = vmatprep.subr.mxu0 %v189
    %423 = vmatpush1.msra.mxu0 %v188
    %424 = vmatprep.subr.mxu0 %v195
    %425 = vmatpush1.msra.mxu0 %v194
    %426 = vmatprep.subr.mxu0 %v201
    %427 = vmatpush1.msra.mxu0 %v200
    %428 = vmatprep.subr.mxu0 %v207
    %429 = vmatpush1.msra.mxu0 %v206
    %430 = vmatprep.subr.mxu0 %v213
    %431 = vmatpush1.msra.mxu0 %v212
    %432 = vmatprep.subr.mxu0 %v219
    %433 = vmatpush1.msra.mxu0 %v218
    %434 = vmatprep.subr.mxu0 %v225
    %435 = vmatpush1.msra.mxu0 %v224
    %436 = vmatprep.subr.mxu0 %v231
    %437 = vmatpush1.msra.mxu0 %v230
    %438 = vmatprep.mubr.f32.mxu0 %v39
    %439 = vmatmul.mubr.f32.gmra.mrb[0].mxu0 %v38
    %v440 = vpop.f32.mrb[0].mxu0
    %v441 = vadd.f32 0.0, %v440
    %v442 = vpop.f32.mrb[0].mxu0
    %v443 = vadd.f32 0.0, %v442
    %444 = vdwg.mxu0
    %445 = vst [vmem:[#allocation7] sm:$0xff] %v299
    %446 = vst [vmem:[#allocation7 + $0x8] sm:$0xff] %v301
    %447 = vst [vmem:[#allocation7 + $0x10] sm:$0xff] %v370
    %448 = vst [vmem:[#allocation7 + $0x18] sm:$0xff] %v372
    %449 = vst [vmem:[#allocation7 + $0x20] sm:$0xff] %v441
    %450 = vst [vmem:[#allocation7 + $0x28] sm:$0xff] %v443
    // Predicated region
    $region18: #{tpu_custom_call.1} parent=1 // pred_check
      _
    $region19: #{tpu_custom_call.1} parent=1 // pred_check_branch
      %452 = sbr.rel (0) target = $region21
    $region20: #{tpu_custom_call.1} parent=1 // pred_region
      %s454 = ssub.s32 768, 768
      %455 = vsyncadd [#allocation4], %s454
      %s457 = sshll.u32 [#allocation7], 4
      %s458 = int_to_ptr.vmem [resolvable:$true] %s457
      %460 = dma.vmem_to_hbm [thread:$0]  %s458, 768, %s2, [#allocation4]
    $region21: #{tpu_custom_call.1} parent=1 // pred_fallthru
      _
    // Predicated region
    $region22: #{tpu_custom_call.1} parent=1 // pred_check
      _
    $region23: #{tpu_custom_call.1} parent=1 // pred_check_branch
      %462 = sbr.rel (0) target = $region25
    $region24: #{tpu_custom_call.1} parent=1 // pred_region
      %463 = dma.done [#allocation4], 768
    $region25: #{tpu_custom_call.1} parent=1 // pred_fallthru
      _
    %464 = vsyncpa [#allocation3], 1
    %465 = vsyncpa [#allocation6], 1
    %466 = vsyncpa [#allocation4], 1

</llo_original>
